<compile_context>
chip_gen: v7x
topology: tpu7x:2x2x1
jax: 0.10.0
libtpu: 0.0.40
codegen_flags: <defaults>
</compile_context>

<pallas_src>
import functools

import jax
import jax.numpy as jnp
import numpy as np
from jax.experimental import pallas as pl
from jax.experimental.pallas import tpu as pltpu


def _round_up(x, m):
    return (x + m - 1) // m * m


# ----------------------------------------------------------------------------
# Kernel
# ----------------------------------------------------------------------------
def beta_nade_kernel(xs_ref, p1_ref, p2_ref, out_ref, *, B, L, Dp, LBp):
    """Fused Beta_NADE forward.

    xs_ref : (LBp, Dp)        x replicated L times along sublanes (row l*B+b = x[b]),
                              zero-padded to LBp rows and Dp lanes.
    p1_ref : (2*LBp+Dp, Dp)   rows [0,LBp): Wh replicated per batch row
                              rows [LBp,2*LBp): bh[l]*r bias rows, replicated
                              rows [2*LBp, 2*LBp+Dp): sum_matrix^T (strict lower tri, padded)
    p2_ref : (LBp+2, 2*Dp)    rows [0,LBp): [AWa^T | AWb^T] replicated per batch row
                              row LBp:   [aba | abb]
                              row LBp+1: [alpha_scale | beta_scale]
    out_ref: (B, 2*Dp)        [alpha*scale | beta*scale], lane-dense.
    """
    xs = xs_ref[...]                                   # (LBp, Dp)
    p1 = p1_ref[...]                                   # (2*LBp+Dp, Dp)
    p2 = p2_ref[...]                                   # (LBp+2, 2*Dp)

    wh_rep = p1[0:LBp, :]                              # (LBp, Dp)
    bias_rep = p1[LBp:2 * LBp, :]                      # (LBp, Dp)
    smT = p1[2 * LBp:2 * LBp + Dp, :]                  # (Dp, Dp)

    awcomb = p2[0:LBp, :]                              # (LBp, 2*Dp)
    bias_out = p2[LBp:LBp + 1, :]                      # (1, 2*Dp)
    scale_row = p2[LBp + 1:LBp + 2, :]                 # (1, 2*Dp)

    # One fused elementwise scale + ONE MXU matmul + ONE sigmoid pass for all
    # L latent dimensions and all batch rows at once.
    xw = xs * wh_rep                                   # (LBp, Dp)
    s = jnp.dot(xw, smT, preferred_element_type=jnp.float32)   # (LBp, Dp)
    h = jax.nn.sigmoid(s + bias_rep)                   # (LBp, Dp)

    # Pack alpha/beta along lanes: one multiply and one reduction for both heads.
    h2 = jnp.concatenate([h, h], axis=-1)              # (LBp, 2*Dp)
    prod = h2 * awcomb                                 # (LBp, 2*Dp)

    # Reduce over the L latent rows belonging to each batch row (row l*B+b).
    acc = prod[0:B, :]                                 # l = 0
    for l in range(1, L):
        acc = acc + prod[l * B:(l + 1) * B, :]

    # Single sigmoid + scale + lane-dense store for both heads.
    out_ref[...] = jax.nn.sigmoid(acc + bias_out) * scale_row


# ----------------------------------------------------------------------------
# Parameter packing (done once) and forward wrapper
# ----------------------------------------------------------------------------
def pack_params(params, batch, inp_dims, latent_dims,
                alpha_scale=100.0, beta_scale=100.0):
    D, L, B = inp_dims, latent_dims, batch
    Dp = _round_up(max(D, 128), 128)
    LB = L * B
    LBp = _round_up(max(LB, 8), 8)

    def pad_lane(a):
        return jnp.pad(a, [(0, 0)] * (a.ndim - 1) + [(0, Dp - a.shape[-1])])

    def pad_rows(a, rows):
        return jnp.pad(a, ((0, rows - a.shape[0]), (0, 0)))

    Wh_p = pad_lane(params["Wh"].astype(jnp.float32))                # (L, Dp)
    # Masked-sum bias: bh[l] * (#ones in row r of sum_matrix) = bh[l] * r.
    bias_rows = params["bh"][:, None] * jnp.arange(D, dtype=jnp.float32)[None, :]
    bias_rows_p = pad_lane(bias_rows)                                # (L, Dp)
    awaT_p = pad_lane(params["AWa"].T.astype(jnp.float32))           # (L, Dp)
    awbT_p = pad_lane(params["AWb"].T.astype(jnp.float32))           # (L, Dp)
    aba_p = pad_lane(params["aba"][None, :].astype(jnp.float32))     # (1, Dp)
    abb_p = pad_lane(params["abb"][None, :].astype(jnp.float32))     # (1, Dp)

    # Replicate per-latent rows B times so row l*B+b lines up with x row l*B+b.
    wh_rep = jnp.repeat(Wh_p, B, axis=0)                             # (LB, Dp)
    bias_rep = jnp.repeat(bias_rows_p, B, axis=0)                    # (LB, Dp)
    awcomb = jnp.repeat(jnp.concatenate([awaT_p, awbT_p], axis=-1), B, axis=0)  # (LB, 2*Dp)

    # sum_matrix^T, strictly lower triangular, padded to (Dp, Dp).
    smT = jnp.tril(jnp.ones((Dp, Dp), jnp.float32), k=-1).T

    slab1 = jnp.concatenate(
        [pad_rows(wh_rep, LBp), pad_rows(bias_rep, LBp), smT], axis=0)   # (2*LBp+Dp, Dp)

    bias_out = jnp.concatenate([aba_p, abb_p], axis=-1)              # (1, 2*Dp)
    scale_row = jnp.concatenate(
        [jnp.full((1, Dp), alpha_scale, jnp.float32),
         jnp.full((1, Dp), beta_scale, jnp.float32)], axis=-1)       # (1, 2*Dp)
    slab2 = jnp.concatenate(
        [pad_rows(awcomb, LBp), bias_out, scale_row], axis=0)        # (LBp+2, 2*Dp)

    meta = dict(B=B, D=D, L=L, Dp=Dp, LBp=LBp)
    return slab1, slab2, meta


def beta_nade_forward(x, slab1, slab2, meta):
    B, D, L, Dp, LBp = meta["B"], meta["D"], meta["L"], meta["Dp"], meta["LBp"]
    assert x.shape == (B, D)

    x_p = jnp.pad(x.astype(jnp.float32), ((0, 0), (0, Dp - D)))      # (B, Dp)
    xs = jnp.pad(jnp.tile(x_p, (L, 1)), ((0, LBp - L * B), (0, 0)))  # (LBp, Dp)

    kernel = functools.partial(beta_nade_kernel, B=B, L=L, Dp=Dp, LBp=LBp)
    vmem = pl.BlockSpec(memory_space=pltpu.MemorySpace.VMEM)

    out = pl.pallas_call(
        kernel,
        out_shape=jax.ShapeDtypeStruct((B, 2 * Dp), jnp.float32),
        in_specs=[vmem, vmem, vmem],
        out_specs=vmem,
    )(xs, slab1, slab2)

    alpha = out[:, :D]
    beta = out[:, Dp:Dp + D]
    return alpha, beta


# ----------------------------------------------------------------------------
# Pure-JAX reference (mirror of the PyTorch shape_vectors forward)
# ----------------------------------------------------------------------------
def beta_nade_reference(x, params, *, alpha_scale=100.0, beta_scale=100.0):
    Wh, bh = params["Wh"], params["bh"]                 # (L, D), (L,)
    D = Wh.shape[1]
    sm = jnp.tril(jnp.ones((D, D), jnp.float32), k=-1)  # strictly lower tri
    dot = x[:, :, None] * Wh.T[None, :, :] + bh[None, None, :]       # (B, D, L)
    h = jax.nn.sigmoid(jnp.einsum("rd,bdl->brl", sm, dot))           # (B, D, L)
    beta = jax.nn.sigmoid(jnp.sum(h * params["AWb"][None], axis=2) + params["abb"])
    alpha = jax.nn.sigmoid(jnp.sum(h * params["AWa"][None], axis=2) + params["aba"])
    return alpha * alpha_scale, beta * beta_scale


def init_params(key, inp_dimensions, latent_dimensions):
    D, L = inp_dimensions, latent_dimensions
    ks = jax.random.split(key, 6)

    def xavier_normal(k, shape, fan_in, fan_out):
        std = float(np.sqrt(2.0 / (fan_in + fan_out)))
        return std * jax.random.normal(k, shape, dtype=jnp.float32)

    Wh = xavier_normal(ks[0], (L, D), fan_in=D, fan_out=L)           # hidden_beta.weight
    bh = jax.random.uniform(ks[1], (L,), jnp.float32,
                            -1.0 / np.sqrt(D), 1.0 / np.sqrt(D))     # hidden_beta.bias
    AWb = xavier_normal(ks[2], (D, L), fan_in=L, fan_out=D)          # alpha_weights_beta
    abb = jax.random.uniform(ks[3], (D,), jnp.float32)               # alpha_bias_beta
    AWa = xavier_normal(ks[4], (D, L), fan_in=L, fan_out=D)          # alpha_weights_alpha
    aba = jax.random.uniform(ks[5], (D,), jnp.float32)               # alpha_bias_alpha
    return dict(Wh=Wh, bh=bh, AWb=AWb, abb=abb, AWa=AWa, aba=aba)


if __name__ == "__main__":
    INP_DIMS = 45       # module default inp_dimensions
    LATENT = 5          # module default latent_dimensions
    BATCH = 2

    key = jax.random.PRNGKey(0)
    k_params, k_x = jax.random.split(key)
    params = init_params(k_params, INP_DIMS, LATENT)
    x = jax.random.uniform(k_x, (BATCH, INP_DIMS), jnp.float32)      # beta-like inputs in [0, 1)

    slab1, slab2, meta = pack_params(params, BATCH, INP_DIMS, LATENT)
    alpha, beta = beta_nade_forward(x, slab1, slab2, meta)
    jax.block_until_ready((alpha, beta))

    alpha_ref, beta_ref = beta_nade_reference(x, params)
    np.testing.assert_allclose(np.asarray(alpha), np.asarray(alpha_ref), rtol=1e-4, atol=1e-3)
    np.testing.assert_allclose(np.asarray(beta), np.asarray(beta_ref), rtol=1e-4, atol=1e-3)

    print("KERNEL_OK")
</pallas_src>

<mosaic_0001>
module attributes {stable_mosaic.version = 11 : i64} {
  func.func @beta_nade_kernel(%arg0: memref<16x128xf32, #tpu.memory_space<vmem>>, %arg1: memref<160x128xf32, #tpu.memory_space<vmem>>, %arg2: memref<18x256xf32, #tpu.memory_space<vmem>>, %arg3: memref<2x256xf32, #tpu.memory_space<vmem>>) attributes {dimension_semantics = [], scalar_prefetch = 0 : i64, scratch_operands = 0 : i64, tpu.core_type = #tpu.core_type<tc>} {
    %c0 = arith.constant 0 : index
    %c0_0 = arith.constant 0 : index
    %0 = vector.load %arg0[%c0, %c0_0] : memref<16x128xf32, #tpu.memory_space<vmem>>, vector<16x128xf32>
    %c0_1 = arith.constant 0 : index
    %c0_2 = arith.constant 0 : index
    %1 = vector.load %arg1[%c0_1, %c0_2] : memref<160x128xf32, #tpu.memory_space<vmem>>, vector<160x128xf32>
    %c0_3 = arith.constant 0 : index
    %c0_4 = arith.constant 0 : index
    %2 = vector.load %arg2[%c0_3, %c0_4] : memref<18x256xf32, #tpu.memory_space<vmem>>, vector<18x256xf32>
    %3 = vector.extract_strided_slice %1 {offsets = [0, 0], sizes = [16, 128], strides = [1, 1]} : vector<160x128xf32> to vector<16x128xf32>
    %4 = vector.extract_strided_slice %1 {offsets = [16, 0], sizes = [16, 128], strides = [1, 1]} : vector<160x128xf32> to vector<16x128xf32>
    %5 = vector.extract_strided_slice %1 {offsets = [32, 0], sizes = [128, 128], strides = [1, 1]} : vector<160x128xf32> to vector<128x128xf32>
    %6 = vector.extract_strided_slice %2 {offsets = [0, 0], sizes = [16, 256], strides = [1, 1]} : vector<18x256xf32> to vector<16x256xf32>
    %7 = vector.extract_strided_slice %2 {offsets = [16, 0], sizes = [1, 256], strides = [1, 1]} : vector<18x256xf32> to vector<1x256xf32>
    %8 = vector.extract_strided_slice %2 {offsets = [17, 0], sizes = [1, 256], strides = [1, 1]} : vector<18x256xf32> to vector<1x256xf32>
    %9 = arith.mulf %0, %3 : vector<16x128xf32>
    %cst = arith.constant dense<0.000000e+00> : vector<16x128xf32>
    %10 = tpu.matmul %9, %5, %cst {dimension_numbers = #tpu.dot_dimension_numbers<[1], [0], [0], [1], [0, 0, 1, 1], [], []>} : vector<16x128xf32>, vector<128x128xf32>, vector<16x128xf32> -> vector<16x128xf32>
    %11 = arith.addf %10, %4 : vector<16x128xf32>
    %12 = arith.negf %11 : vector<16x128xf32>
    %13 = math.exp %12 : vector<16x128xf32>
    %cst_5 = arith.constant 1.000000e+00 : f32
    %14 = vector.broadcast %cst_5 : f32 to vector<16x128xf32>
    %15 = arith.addf %14, %13 : vector<16x128xf32>
    %16 = arith.divf %14, %15 : vector<16x128xf32>
    %17 = tpu.concatenate %16, %16 in 1 : vector<16x128xf32>, vector<16x128xf32> -> vector<16x256xf32>
    %18 = arith.mulf %17, %6 : vector<16x256xf32>
    %19 = vector.extract_strided_slice %18 {offsets = [0, 0], sizes = [2, 256], strides = [1, 1]} : vector<16x256xf32> to vector<2x256xf32>
    %20 = vector.extract_strided_slice %18 {offsets = [2, 0], sizes = [2, 256], strides = [1, 1]} : vector<16x256xf32> to vector<2x256xf32>
    %21 = arith.addf %19, %20 : vector<2x256xf32>
    %22 = vector.extract_strided_slice %18 {offsets = [4, 0], sizes = [2, 256], strides = [1, 1]} : vector<16x256xf32> to vector<2x256xf32>
    %23 = arith.addf %21, %22 : vector<2x256xf32>
    %24 = vector.extract_strided_slice %18 {offsets = [6, 0], sizes = [2, 256], strides = [1, 1]} : vector<16x256xf32> to vector<2x256xf32>
    %25 = arith.addf %23, %24 : vector<2x256xf32>
    %26 = vector.extract_strided_slice %18 {offsets = [8, 0], sizes = [2, 256], strides = [1, 1]} : vector<16x256xf32> to vector<2x256xf32>
    %27 = arith.addf %25, %26 : vector<2x256xf32>
    %28 = vector.broadcast %7 : vector<1x256xf32> to vector<2x256xf32>
    %29 = arith.addf %27, %28 : vector<2x256xf32>
    %30 = arith.negf %29 : vector<2x256xf32>
    %31 = math.exp %30 : vector<2x256xf32>
    %cst_6 = arith.constant 1.000000e+00 : f32
    %32 = vector.broadcast %cst_6 : f32 to vector<2x256xf32>
    %33 = arith.addf %32, %31 : vector<2x256xf32>
    %34 = arith.divf %32, %33 : vector<2x256xf32>
    %35 = vector.broadcast %8 : vector<1x256xf32> to vector<2x256xf32>
    %36 = arith.mulf %34, %35 : vector<2x256xf32>
    %c0_7 = arith.constant 0 : index
    %c0_8 = arith.constant 0 : index
    %37 = vector.load %arg3[%c0_7, %c0_8] : memref<2x256xf32, #tpu.memory_space<vmem>>, vector<2x256xf32>
    tpu.vector_store %arg3[%c0_7, %c0_8], %36 {strides = array<i32>} : memref<2x256xf32, #tpu.memory_space<vmem>>, vector<2x256xf32>,
    return
  }
}

</mosaic_0001>

<llo_original>
// kernel: tpu_custom_call.1
$region0: #{tpu_custom_call.1}
  #allocation0 [shape = 'u32[]', space=smem, size = 0x4, offset = 0x4, fixed_abs, tag = 'smem constant byte address 0x4 - core index']
  #allocation1 [shape = 'u32[144,128]{1,0:T(1,128)}', space=vmem, size = 0x12000, scoped, tag = 'internal scratch']
  %s0 = inlined_call_operand.hbm [shape: f32[16,128], index: 0, kind: input, shape index: {}]
  %s1 = inlined_call_operand.hbm [shape: f32[160,128], index: 1, kind: input, shape index: {}]
  %s2 = inlined_call_operand.hbm [shape: f32[18,256], index: 2, kind: input, shape index: {}]
  %s3 = inlined_call_operand.hbm [shape: f32[2,256], index: 3, kind: output, shape index: {}]
  %s4 = sld [smem:[#allocation0]]
  $region34: #{tpu_custom_call.1} parent=0
    _
  %s6 = ssub.s32 1, %s4
  %s7 = scalar_select 0, %s6, %s4
  $region1: #{tpu_custom_call.1} parent=0
    #allocation2 [shape = 'u8[8192]{0}', space=vmem, size = 0x2000, scoped, tag = 'input window, operand 0, single buffered']
    #allocation3 [shape = 's32[1]{0}', space=sflag, size = 0x4, scoped, tag = 'scoped memory for tpu_custom_call.1']
    #allocation4 [shape = 's32[1]{0}', space=sflag, size = 0x4, scoped, tag = 'scoped memory for tpu_custom_call.1']
    #allocation5 [shape = 'u8[81920]{0}', space=vmem, size = 0x14000, scoped, tag = 'input window, operand 1, single buffered']
    #allocation6 [shape = 's32[1]{0}', space=sflag, size = 0x4, scoped, tag = 'scoped memory for tpu_custom_call.1']
    #allocation7 [shape = 'u8[24576]{0}', space=vmem, size = 0x6000, scoped, tag = 'input window, operand 2, single buffered']
    #allocation8 [shape = 'u8[2048]{0}', space=vmem, size = 0x800, scoped, tag = 'output window, operand 0, single buffered']
    %8 = vsyncpa [#allocation3], 0
    %9 = vsyncpa [#allocation6], 0
    %10 = vsyncpa [#allocation4], 0
    // Predicated region
    $region2: #{tpu_custom_call.1} parent=1 // pred_check
      _
    $region3: #{tpu_custom_call.1} parent=1 // pred_check_branch
      %12 = sbr.rel (0) target = $region5
    $region4: #{tpu_custom_call.1} parent=1 // pred_region
      %s14 = ssub.s32 256, 256
      %15 = vsyncadd [#allocation3], %s14
      %s16 = sshll.u32 [#allocation2], 4
      %s17 = int_to_ptr.vmem [resolvable:$true] %s16
      %22 = dma.hbm_to_vmem [thread:$0]  %s0, 256, %s17, [#allocation3], 128, 128, 8
    $region5: #{tpu_custom_call.1} parent=1 // pred_fallthru
      _
    // Predicated region
    $region6: #{tpu_custom_call.1} parent=1 // pred_check
      _
    $region7: #{tpu_custom_call.1} parent=1 // pred_check_branch
      %24 = sbr.rel (0) target = $region9
    $region8: #{tpu_custom_call.1} parent=1 // pred_region
      %s26 = ssub.s32 2560, 2560
      %27 = vsyncadd [#allocation6], %s26
      %s28 = sshll.u32 [#allocation5], 4
      %s29 = int_to_ptr.vmem [resolvable:$true] %s28
      %34 = dma.hbm_to_vmem [thread:$0]  %s1, 2560, %s29, [#allocation6], 128, 128, 8
    $region9: #{tpu_custom_call.1} parent=1 // pred_fallthru
      _
    // Predicated region
    $region10: #{tpu_custom_call.1} parent=1 // pred_check
      _
    $region11: #{tpu_custom_call.1} parent=1 // pred_check_branch
      %36 = sbr.rel (0) target = $region13
    $region12: #{tpu_custom_call.1} parent=1 // pred_region
      %s38 = ssub.s32 768, 768
      %39 = vsyncadd [#allocation6], %s38
      %s40 = sshll.u32 [#allocation7], 4
      %s41 = int_to_ptr.vmem [resolvable:$true] %s40
      %46 = dma.hbm_to_vmem [thread:$0]  %s2, 768, %s41, [#allocation6], 256, 256, 16
    $region13: #{tpu_custom_call.1} parent=1 // pred_fallthru
      _
    // Predicated region
    $region14: #{tpu_custom_call.1} parent=1 // pred_check
      _
    $region15: #{tpu_custom_call.1} parent=1 // pred_check_branch
      %48 = sbr.rel (0) target = $region17
    $region16: #{tpu_custom_call.1} parent=1 // pred_region
      %49 = dma.done [#allocation3], 256
    $region17: #{tpu_custom_call.1} parent=1 // pred_fallthru
      _
    // Predicated region
    $region18: #{tpu_custom_call.1} parent=1 // pred_check
      _
    $region19: #{tpu_custom_call.1} parent=1 // pred_check_branch
      %51 = sbr.rel (0) target = $region21
    $region20: #{tpu_custom_call.1} parent=1 // pred_region
      %52 = dma.done [#allocation6], 2560
    $region21: #{tpu_custom_call.1} parent=1 // pred_fallthru
      _
    // Predicated region
    $region22: #{tpu_custom_call.1} parent=1 // pred_check
      _
    $region23: #{tpu_custom_call.1} parent=1 // pred_check_branch
      %54 = sbr.rel (0) target = $region25
    $region24: #{tpu_custom_call.1} parent=1 // pred_region
      %55 = dma.done [#allocation6], 768
    $region25: #{tpu_custom_call.1} parent=1 // pred_fallthru
      _
    %v56 = vld [vmem:[#allocation2] sm:$0xff]
    %v57 = vld [vmem:[#allocation2 + $0x8] sm:$0xff]
    %v58 = vld [vmem:[#allocation5] sm:$0xff]
    %v59 = vld [vmem:[#allocation5 + $0x8] sm:$0xff]
    %v60 = vld [vmem:[#allocation5 + $0x10] sm:$0xff]
    %v61 = vld [vmem:[#allocation5 + $0x18] sm:$0xff]
    %v62 = vld [vmem:[#allocation5 + $0x20] sm:$0xff]
    %v63 = vld [vmem:[#allocation5 + $0x28] sm:$0xff]
    %v64 = vld [vmem:[#allocation5 + $0x30] sm:$0xff]
    %v65 = vld [vmem:[#allocation5 + $0x38] sm:$0xff]
    %v66 = vld [vmem:[#allocation5 + $0x40] sm:$0xff]
    %v67 = vld [vmem:[#allocation5 + $0x48] sm:$0xff]
    %v68 = vld [vmem:[#allocation5 + $0x50] sm:$0xff]
    %v69 = vld [vmem:[#allocation5 + $0x58] sm:$0xff]
    %v70 = vld [vmem:[#allocation5 + $0x60] sm:$0xff]
    %v71 = vld [vmem:[#allocation5 + $0x68] sm:$0xff]
    %v72 = vld [vmem:[#allocation5 + $0x70] sm:$0xff]
    %v73 = vld [vmem:[#allocation5 + $0x78] sm:$0xff]
    %v74 = vld [vmem:[#allocation5 + $0x80] sm:$0xff]
    %v75 = vld [vmem:[#allocation5 + $0x88] sm:$0xff]
    %v76 = vld [vmem:[#allocation5 + $0x90] sm:$0xff]
    %v77 = vld [vmem:[#allocation5 + $0x98] sm:$0xff]
    %v78 = vld [vmem:[#allocation7] sm:$0xff]
    %v79 = vld [vmem:[#allocation7 + $0x8] sm:$0xff]
    %v80 = vld [vmem:[#allocation7 + $0x10] sm:$0xff]
    %v81 = vld [vmem:[#allocation7 + $0x18] sm:$0xff]
    %v82 = vld [vmem:[#allocation7 + $0x20] sm:$0x3]
    %v83 = vld [vmem:[#allocation7 + $0x28] sm:$0x3]
    %v84 = vmul.f32 %v56, %v58
    %v85 = vmul.f32 %v57, %v59
    %86 = vmatprep.subr.mxu0 0.0
    %87 = vmatpush1.msra.mxu0 %v62
    %88 = vmatprep.subr.mxu0 0.0
    %89 = vmatpush1.msra.mxu0 %v63
    %90 = vmatprep.subr.mxu0 0.0
    %91 = vmatpush1.msra.mxu0 %v64
    %92 = vmatprep.subr.mxu0 0.0
    %93 = vmatpush1.msra.mxu0 %v65
    %94 = vmatprep.subr.mxu0 0.0
    %95 = vmatpush1.msra.mxu0 %v66
    %96 = vmatprep.subr.mxu0 0.0
    %97 = vmatpush1.msra.mxu0 %v67
    %98 = vmatprep.subr.mxu0 0.0
    %99 = vmatpush1.msra.mxu0 %v68
    %100 = vmatprep.subr.mxu0 0.0
    %101 = vmatpush1.msra.mxu0 %v69
    %102 = vmatprep.subr.mxu0 0.0
    %103 = vmatpush1.msra.mxu0 %v70
    %104 = vmatprep.subr.mxu0 0.0
    %105 = vmatpush1.msra.mxu0 %v71
    %106 = vmatprep.subr.mxu0 0.0
    %107 = vmatpush1.msra.mxu0 %v72
    %108 = vmatprep.subr.mxu0 0.0
    %109 = vmatpush1.msra.mxu0 %v73
    %110 = vmatprep.subr.mxu0 0.0
    %111 = vmatpush1.msra.mxu0 %v74
    %112 = vmatprep.subr.mxu0 0.0
    %113 = vmatpush1.msra.mxu0 %v75
    %114 = vmatprep.subr.mxu0 0.0
    %115 = vmatpush1.msra.mxu0 %v76
    %116 = vmatprep.subr.mxu0 0.0
    %117 = vmatpush1.msra.mxu0 %v77
    %118 = vmatprep.subr.mxu0 0.0
    %119 = vmatpush1.msra.mxu0 0.0
    %120 = vmatprep.subr.mxu0 0.0
    %121 = vmatpush1.msra.mxu0 0.0
    %122 = vmatprep.subr.mxu0 0.0
    %123 = vmatpush1.msra.mxu0 0.0
    %124 = vmatprep.subr.mxu0 0.0
    %125 = vmatpush1.msra.mxu0 0.0
    %126 = vmatprep.subr.mxu0 0.0
    %127 = vmatpush1.msra.mxu0 0.0
    %128 = vmatprep.subr.mxu0 0.0
    %129 = vmatpush1.msra.mxu0 0.0
    %130 = vmatprep.subr.mxu0 0.0
    %131 = vmatpush1.msra.mxu0 0.0
    %132 = vmatprep.subr.mxu0 0.0
    %133 = vmatpush1.msra.mxu0 0.0
    %134 = vmatprep.subr.mxu0 0.0
    %135 = vmatpush1.msra.mxu0 0.0
    %136 = vmatprep.subr.mxu0 0.0
    %137 = vmatpush1.msra.mxu0 0.0
    %138 = vmatprep.subr.mxu0 0.0
    %139 = vmatpush1.msra.mxu0 0.0
    %140 = vmatprep.subr.mxu0 0.0
    %141 = vmatpush1.msra.mxu0 0.0
    %142 = vmatprep.subr.mxu0 0.0
    %143 = vmatpush1.msra.mxu0 0.0
    %144 = vmatprep.subr.mxu0 0.0
    %145 = vmatpush1.msra.mxu0 0.0
    %146 = vmatprep.subr.mxu0 0.0
    %147 = vmatpush1.msra.mxu0 0.0
    %148 = vmatprep.subr.mxu0 0.0
    %149 = vmatpush1.msra.mxu0 0.0
    %150 = vmatprep.mubr.f32.mxu0 0.0
    %151 = vmatmul.mubr.f32.gmra.mrb[0].mxu0 %v84
    %v152 = vpop.f32.mrb[0].mxu0
    %v153 = vadd.f32 %v60, %v152
    %v154 = vpop.f32.mrb[0].mxu0
    %155 = vmatprep.mubr.f32.mxu0 0.0
    %156 = vmatmul.mubr.f32.gmra.mrb[0].mxu0 %v85
    %v157 = vpop.f32.mrb[0].mxu0
    %v158 = vadd.f32 %v61, %v157
    %v159 = vpop.f32.mrb[0].mxu0
    %160 = vdwg.mxu0
    %v161 = vxor.u32 %v153, 2147483648
    %v162 = vxor.u32 %v158, 2147483648
    %v163 = vmul.f32 %v161, 1.442695
    %v164 = vpow.pop %v163
    %v165 = vmul.f32 %v162, 1.442695
    %v166 = vpow.pop %v165
    %v167 = vadd.f32 %v164, 1.0
    %v168 = vadd.f32 %v166, 1.0
    %v169 = vrcp.pop %v167
    %v170 = vmul.f32 1.0, %v169
    %v171 = vrcp.pop %v168
    %v172 = vmul.f32 1.0, %v171
    %v173 = vmul.f32 %v170, %v78
    %v174 = vmul.f32 %v170, %v79
    %v175 = vmul.f32 %v172, %v80
    %v176 = vmul.f32 %v172, %v81
    %v179 = vrot.slane %v173, 2
    %v180 = vrot.slane %v174, 2
    %v183 = vadd.f32 %v173, %v179
    %v184 = vadd.f32 %v174, %v180
    %v185 = vrot.slane %v173, 4
    %v186 = vrot.slane %v174, 4
    %v189 = vadd.f32 %v183, %v185
    %v190 = vadd.f32 %v184, %v186
    %v191 = vrot.slane %v173, 6
    %v192 = vrot.slane %v174, 6
    %v195 = vadd.f32 %v189, %v191
    %v196 = vadd.f32 %v190, %v192
    %v197 = vadd.f32 %v195, %v175
    %v198 = vadd.f32 %v196, %v176
    %v199 = vlaneseq
    %v200 = vshrl.u32 %v199, 7
    %v201 = vsub.s32 0, %v200
    %v202 = vrot.slane %v82, %v201
    %v203 = vlaneseq
    %v204 = vshrl.u32 %v203, 7
    %v205 = vsub.s32 0, %v204
    %v206 = vrot.slane %v83, %v205
    %v207 = vadd.f32 %v197, %v202
    %v208 = vadd.f32 %v198, %v206
    %v209 = vxor.u32 %v207, 2147483648
    %v210 = vxor.u32 %v208, 2147483648
    %v211 = vmul.f32 %v209, 1.442695
    %v212 = vpow.pop %v211
    %v213 = vmul.f32 %v210, 1.442695
    %v214 = vpow.pop %v213
    %v215 = vadd.f32 %v212, 1.0
    %v216 = vadd.f32 %v214, 1.0
    %v217 = vrcp.pop %v215
    %v218 = vmul.f32 1.0, %v217
    %v219 = vrcp.pop %v216
    %v220 = vmul.f32 1.0, %v219
    %v221 = vlaneseq
    %v222 = vshrl.u32 %v221, 7
    %v223 = vsub.s32 1, %v222
    %v224 = vrot.slane %v82, %v223
    %v225 = vlaneseq
    %v226 = vshrl.u32 %v225, 7
    %v227 = vsub.s32 1, %v226
    %v228 = vrot.slane %v83, %v227
    %v229 = vmul.f32 %v218, %v224
    %v230 = vmul.f32 %v220, %v228
    %v233 = vcombine.low %v229, %v230
    %v235 = vunpack.c.l.s4 1983009808
    %v236 = vunpack.c.0.s8 %v235
    %v237 = vlaneseq
    %v238 = vshrl.u32 %v237, 7
    %v239 = vsub.s32 %v236, %v238
    %v240 = vrot.slane %v233, %v239
    %242 = vst [vmem:[#allocation8] sm:$0xf] %v240
    // Predicated region
    $region26: #{tpu_custom_call.1} parent=1 // pred_check
      _
    $region27: #{tpu_custom_call.1} parent=1 // pred_check_branch
      %244 = sbr.rel (0) target = $region29
    $region28: #{tpu_custom_call.1} parent=1 // pred_region
      %s246 = ssub.s32 64, 64
      %247 = vsyncadd [#allocation4], %s246
      %s249 = sshll.u32 [#allocation8], 4
      %s250 = int_to_ptr.vmem [resolvable:$true] %s249
      %252 = dma.vmem_to_hbm [thread:$0]  %s250, 64, %s3, [#allocation4]
    $region29: #{tpu_custom_call.1} parent=1 // pred_fallthru
      _
    // Predicated region
    $region30: #{tpu_custom_call.1} parent=1 // pred_check
      _
    $region31: #{tpu_custom_call.1} parent=1 // pred_check_branch
      %254 = sbr.rel (0) target = $region33
    $region32: #{tpu_custom_call.1} parent=1 // pred_region
      %255 = dma.done [#allocation4], 64
    $region33: #{tpu_custom_call.1} parent=1 // pred_fallthru
      _
    %256 = vsyncpa [#allocation3], 1
    %257 = vsyncpa [#allocation6], 1
    %258 = vsyncpa [#allocation4], 1

</llo_original>
